<compile_context>
chip_gen: v5e
topology: v5e:2x2
jax: 0.10.0
libtpu: 0.0.40
codegen_flags: <defaults>
</compile_context>

<pallas_src>
import functools

import jax
import jax.numpy as jnp
from jax.experimental import pallas as pl
from jax.experimental.pallas import tpu as pltpu

# Lane-multiple padded layer widths.
H1_PAD = 512     # fc1: 400 -> 512
H2_PAD = 384     # fc2: 300 -> 384
ACT_PAD = 128    # mu : n_actions -> 128 (one full lane register, dense stores)

MAX_TILE_B = 2048   # batch-tile cap; ~10-15 MiB live VMEM at 2048 rows


def actor_mlp_kernel(x_ref, w1_ref, b1_ref, w2_ref, b2_ref, w3_ref, b3_ref, out_ref):
    # State arrives f32; cast to bf16 in-kernel (VPU op hidden under MXU slack).
    x = x_ref[...].astype(jnp.bfloat16)
    # fc1 + ReLU  (bf16 operands on the MXU, f32 accumulate; elementwise in f32)
    h1 = jnp.dot(x, w1_ref[...], preferred_element_type=jnp.float32)
    h1 = jnp.maximum(h1 + b1_ref[...], 0.0)
    # fc2 + ReLU
    h2 = jnp.dot(h1.astype(jnp.bfloat16), w2_ref[...],
                 preferred_element_type=jnp.float32)
    h2 = jnp.maximum(h2 + b2_ref[...], 0.0)
    # mu + tanh, bf16 writeback
    o = jnp.dot(h2.astype(jnp.bfloat16), w3_ref[...],
                preferred_element_type=jnp.float32)
    out_ref[...] = jnp.tanh(o + b3_ref[...]).astype(out_ref.dtype)


def _cdiv(a, b):
    return (a + b - 1) // b


def _round_up(x, m):
    return _cdiv(x, m) * m


def init_actor_params(key, state_dim, n_actions):
    """PyTorch-like nn.Linear init (U[-1/sqrt(fan_in), +1/sqrt(fan_in)]), f32.

    Weights stored transposed vs PyTorch: (in_features, out_features).
    Biases stored as (1, out_features).
    """
    dims = [(state_dim, 400), (400, 300), (300, n_actions)]
    params = {}
    for i, (fan_in, fan_out) in enumerate(dims, start=1):
        key, kw, kb = jax.random.split(key, 3)
        bound = 1.0 / jnp.sqrt(jnp.float32(fan_in))
        params[f"w{i}"] = jax.random.uniform(
            kw, (fan_in, fan_out), jnp.float32, -bound, bound)
        params[f"b{i}"] = jax.random.uniform(
            kb, (1, fan_out), jnp.float32, -bound, bound)
    return params


def prepare_actor_params(params):
    """Zero-pad layer widths to lane multiples and cast weights to bf16.

    Exact: zero weight/bias columns -> zero pre-activations, ReLU(0)=0, and the
    extra tanh(0)=0 output columns are sliced away in the wrapper.
    """
    assert params["w1"].shape[1] <= H1_PAD, "fc1 width exceeds H1_PAD"
    assert params["w2"].shape[1] <= H2_PAD, "fc2 width exceeds H2_PAD"
    assert params["w3"].shape[1] <= ACT_PAD, "n_actions exceeds ACT_PAD"

    def pad2(a, rows, cols):
        return jnp.pad(a, ((0, rows - a.shape[0]), (0, cols - a.shape[1])))

    state_dim = params["w1"].shape[0]          # contraction dim left unpadded
    return dict(
        w1=pad2(params["w1"], state_dim, H1_PAD).astype(jnp.bfloat16),
        b1=pad2(params["b1"], 1, H1_PAD).astype(jnp.float32),
        w2=pad2(params["w2"], H1_PAD, H2_PAD).astype(jnp.bfloat16),
        b2=pad2(params["b2"], 1, H2_PAD).astype(jnp.float32),
        w3=pad2(params["w3"], H2_PAD, ACT_PAD).astype(jnp.bfloat16),
        b3=pad2(params["b3"], 1, ACT_PAD).astype(jnp.float32),
    )


@functools.partial(jax.jit, static_argnames=("n_actions",))
def actor_forward(state, kparams, *, n_actions):
    """state: (B, state_dim) f32.  kparams: output of prepare_actor_params.

    Returns (B, n_actions) f32.
    """
    B, state_dim = state.shape

    # Pick an even tile count first (both v7x TensorCores get work on the
    # parallel axis), then derive the per-tile row count: multiple of 16 for
    # bf16 (16,128) sublane packing, capped at MAX_TILE_B for v7x VMEM headroom.
    num_tiles = max(1, _cdiv(B, MAX_TILE_B))
    num_tiles += num_tiles % 2                 # even -> shards across 2 TCs
    tb = _round_up(_cdiv(B, num_tiles), 16)
    b_pad = num_tiles * tb

    # Pad batch only if required; state stays f32 (cast happens in-kernel).
    x = state if b_pad == B else jnp.pad(state, ((0, b_pad - B), (0, 0)))

    w1, b1 = kparams["w1"], kparams["b1"]
    w2, b2 = kparams["w2"], kparams["b2"]
    w3, b3 = kparams["w3"], kparams["b3"]

    def resident(arr):
        # Constant block index -> weight/bias stays in VMEM across the grid.
        return pl.BlockSpec(arr.shape, lambda i: (0, 0))

    flops = 2 * b_pad * (state_dim * H1_PAD + H1_PAD * H2_PAD + H2_PAD * ACT_PAD)
    bytes_accessed = (
        x.size * x.dtype.itemsize
        + sum(a.size * a.dtype.itemsize for a in (w1, b1, w2, b2, w3, b3))
        + b_pad * ACT_PAD * 2                  # bf16 output writeback
    )

    out = pl.pallas_call(
        actor_mlp_kernel,
        out_shape=jax.ShapeDtypeStruct((b_pad, ACT_PAD), jnp.bfloat16),
        grid=(num_tiles,),
        in_specs=[
            pl.BlockSpec((tb, state_dim), lambda i: (i, 0)),
            resident(w1), resident(b1),
            resident(w2), resident(b2),
            resident(w3), resident(b3),
        ],
        out_specs=pl.BlockSpec((tb, ACT_PAD), lambda i: (i, 0)),
        compiler_params=pltpu.CompilerParams(
            dimension_semantics=("parallel",),
        ),
        cost_estimate=pl.CostEstimate(
            flops=flops,
            transcendentals=b_pad * ACT_PAD,
            bytes_accessed=bytes_accessed,
        ),
    )(x, w1, b1, w2, b2, w3, b3)

    return out[:B, :n_actions].astype(jnp.float32)


def actor_forward_ref(state, params):
    """Pure-JAX f32 reference (matches the PyTorch module)."""
    h1 = jnp.maximum(state @ params["w1"] + params["b1"], 0.0)
    h2 = jnp.maximum(h1 @ params["w2"] + params["b2"], 0.0)
    return jnp.tanh(h2 @ params["w3"] + params["b3"])


def actor_forward_ref_bf16(state, kparams, n_actions):
    """Pure-JAX reference mirroring the kernel's bf16/f32 recipe exactly."""
    x = state.astype(jnp.bfloat16)
    h1 = jnp.maximum(
        jnp.dot(x, kparams["w1"], preferred_element_type=jnp.float32) + kparams["b1"], 0.0)
    h2 = jnp.maximum(
        jnp.dot(h1.astype(jnp.bfloat16), kparams["w2"],
                preferred_element_type=jnp.float32) + kparams["b2"], 0.0)
    o = jnp.tanh(
        jnp.dot(h2.astype(jnp.bfloat16), kparams["w3"],
                preferred_element_type=jnp.float32) + kparams["b3"])
    # Kernel writes bf16; mirror the rounding before upcast.
    return o.astype(jnp.bfloat16).astype(jnp.float32)[:, :n_actions]


if __name__ == "__main__":
    key = jax.random.PRNGKey(0)
    batch = 2
    state_dim = 8      # e.g. state_dim = [8] in the PyTorch ctor
    n_actions = 4

    key, k_params, k_state = jax.random.split(key, 3)
    raw_params = init_actor_params(k_params, state_dim, n_actions)
    kernel_params = prepare_actor_params(raw_params)
    state = jax.random.normal(k_state, (batch, state_dim), jnp.float32)

    out = actor_forward(state, kernel_params, n_actions=n_actions)
    out = jax.block_until_ready(out)

    assert out.shape == (batch, n_actions)

    # Bit-level recipe check (same bf16 operands / f32 accumulation / bf16 store).
    ref_bf16 = actor_forward_ref_bf16(state, kernel_params, n_actions)
    assert jnp.allclose(out, ref_bf16, atol=5e-3, rtol=5e-3), \
        float(jnp.max(jnp.abs(out - ref_bf16)))

    # Semantics check against the full-f32 PyTorch-equivalent reference
    # (tolerance sized for bf16 weight/output quantization).
    ref_f32 = actor_forward_ref(state, raw_params)
    assert jnp.allclose(out, ref_f32, atol=3e-2, rtol=3e-2), \
        float(jnp.max(jnp.abs(out - ref_f32)))

    # TODO(synk): Adam optimizer / checkpoint save-load from the PyTorch module
    # are training/IO plumbing, not part of the forward pass.

    print("KERNEL_OK")
</pallas_src>

<mosaic_0001>
module attributes {stable_mosaic.version = 11 : i64} {
  func.func @actor_mlp_kernel(%arg0: i32, %arg1: memref<16x8xf32, #tpu.memory_space<vmem>>, %arg2: memref<8x512xbf16, #tpu.memory_space<vmem>>, %arg3: memref<1x512xf32, #tpu.memory_space<vmem>>, %arg4: memref<512x384xbf16, #tpu.memory_space<vmem>>, %arg5: memref<1x384xf32, #tpu.memory_space<vmem>>, %arg6: memref<384x128xbf16, #tpu.memory_space<vmem>>, %arg7: memref<1x128xf32, #tpu.memory_space<vmem>>, %arg8: memref<16x128xbf16, #tpu.memory_space<vmem>>) attributes {dimension_semantics = [#tpu.dimension_semantics<parallel>], iteration_bounds = array<i64: 2>, scalar_prefetch = 0 : i64, scratch_operands = 0 : i64, tpu.core_type = #tpu.core_type<tc>, window_params = [{transform_indices = @transform_0, window_bounds = array<i64: 16, 8>}, {pipeline_mode = #tpu.pipeline_mode<synchronous>, transform_indices = @transform_1, window_bounds = array<i64: 8, 512>}, {pipeline_mode = #tpu.pipeline_mode<synchronous>, transform_indices = @transform_2, window_bounds = array<i64: 1, 512>}, {pipeline_mode = #tpu.pipeline_mode<synchronous>, transform_indices = @transform_3, window_bounds = array<i64: 512, 384>}, {pipeline_mode = #tpu.pipeline_mode<synchronous>, transform_indices = @transform_4, window_bounds = array<i64: 1, 384>}, {pipeline_mode = #tpu.pipeline_mode<synchronous>, transform_indices = @transform_5, window_bounds = array<i64: 384, 128>}, {pipeline_mode = #tpu.pipeline_mode<synchronous>, transform_indices = @transform_6, window_bounds = array<i64: 1, 128>}, {transform_indices = @transform_7, window_bounds = array<i64: 16, 128>}]} {
    %c0 = arith.constant 0 : index
    %c0_0 = arith.constant 0 : index
    %0 = vector.load %arg1[%c0, %c0_0] : memref<16x8xf32, #tpu.memory_space<vmem>>, vector<16x8xf32>
    %1 = arith.truncf %0 : vector<16x8xf32> to vector<16x8xbf16>
    %c0_1 = arith.constant 0 : index
    %c0_2 = arith.constant 0 : index
    %2 = vector.load %arg2[%c0_1, %c0_2] : memref<8x512xbf16, #tpu.memory_space<vmem>>, vector<8x512xbf16>
    %cst = arith.constant dense<0.000000e+00> : vector<16x512xf32>
    %3 = tpu.matmul %1, %2, %cst {dimension_numbers = #tpu.dot_dimension_numbers<[1], [0], [0], [1], [0, 0, 1, 1], [], []>} : vector<16x8xbf16>, vector<8x512xbf16>, vector<16x512xf32> -> vector<16x512xf32>
    %c0_3 = arith.constant 0 : index
    %c0_4 = arith.constant 0 : index
    %4 = vector.load %arg3[%c0_3, %c0_4] : memref<1x512xf32, #tpu.memory_space<vmem>>, vector<1x512xf32>
    %5 = vector.broadcast %4 : vector<1x512xf32> to vector<16x512xf32>
    %6 = arith.addf %3, %5 : vector<16x512xf32>
    %cst_5 = arith.constant 0.000000e+00 : f32
    %7 = vector.broadcast %cst_5 : f32 to vector<16x512xf32>
    %8 = arith.maximumf %6, %7 : vector<16x512xf32>
    %9 = arith.truncf %8 : vector<16x512xf32> to vector<16x512xbf16>
    %c0_6 = arith.constant 0 : index
    %c0_7 = arith.constant 0 : index
    %10 = vector.load %arg4[%c0_6, %c0_7] : memref<512x384xbf16, #tpu.memory_space<vmem>>, vector<512x384xbf16>
    %cst_8 = arith.constant dense<0.000000e+00> : vector<16x384xf32>
    %11 = tpu.matmul %9, %10, %cst_8 {dimension_numbers = #tpu.dot_dimension_numbers<[1], [0], [0], [1], [0, 0, 1, 1], [], []>} : vector<16x512xbf16>, vector<512x384xbf16>, vector<16x384xf32> -> vector<16x384xf32>
    %c0_9 = arith.constant 0 : index
    %c0_10 = arith.constant 0 : index
    %12 = vector.load %arg5[%c0_9, %c0_10] : memref<1x384xf32, #tpu.memory_space<vmem>>, vector<1x384xf32>
    %13 = vector.broadcast %12 : vector<1x384xf32> to vector<16x384xf32>
    %14 = arith.addf %11, %13 : vector<16x384xf32>
    %cst_11 = arith.constant 0.000000e+00 : f32
    %15 = vector.broadcast %cst_11 : f32 to vector<16x384xf32>
    %16 = arith.maximumf %14, %15 : vector<16x384xf32>
    %17 = arith.truncf %16 : vector<16x384xf32> to vector<16x384xbf16>
    %c0_12 = arith.constant 0 : index
    %c0_13 = arith.constant 0 : index
    %18 = vector.load %arg6[%c0_12, %c0_13] : memref<384x128xbf16, #tpu.memory_space<vmem>>, vector<384x128xbf16>
    %cst_14 = arith.constant dense<0.000000e+00> : vector<16x128xf32>
    %19 = tpu.matmul %17, %18, %cst_14 {dimension_numbers = #tpu.dot_dimension_numbers<[1], [0], [0], [1], [0, 0, 1, 1], [], []>} : vector<16x384xbf16>, vector<384x128xbf16>, vector<16x128xf32> -> vector<16x128xf32>
    %c0_15 = arith.constant 0 : index
    %c0_16 = arith.constant 0 : index
    %20 = vector.load %arg7[%c0_15, %c0_16] : memref<1x128xf32, #tpu.memory_space<vmem>>, vector<1x128xf32>
    %21 = vector.broadcast %20 : vector<1x128xf32> to vector<16x128xf32>
    %22 = arith.addf %19, %21 : vector<16x128xf32>
    %23 = math.tanh %22 : vector<16x128xf32>
    %24 = arith.truncf %23 : vector<16x128xf32> to vector<16x128xbf16>
    %c0_17 = arith.constant 0 : index
    %c0_18 = arith.constant 0 : index
    %25 = vector.load %arg8[%c0_17, %c0_18] : memref<16x128xbf16, #tpu.memory_space<vmem>>, vector<16x128xbf16>
    tpu.vector_store %arg8[%c0_17, %c0_18], %24 {strides = array<i32>} : memref<16x128xbf16, #tpu.memory_space<vmem>>, vector<16x128xbf16>,
    return
  }
  func.func @transform_0(%arg0: i32) -> (i32, i32) {
    %c0_i32 = arith.constant 0 : i32
    %c0_i32_0 = arith.constant 0 : i32
    return %arg0, %c0_i32 : i32, i32
  }
  func.func @transform_1(%arg0: i32) -> (i32, i32) {
    %c0_i32 = arith.constant 0 : i32
    %c0_i32_0 = arith.constant 0 : i32
    %c0_i32_1 = arith.constant 0 : i32
    return %c0_i32, %c0_i32_0 : i32, i32
  }
  func.func @transform_2(%arg0: i32) -> (i32, i32) {
    %c0_i32 = arith.constant 0 : i32
    %c0_i32_0 = arith.constant 0 : i32
    %c0_i32_1 = arith.constant 0 : i32
    return %c0_i32, %c0_i32_0 : i32, i32
  }
  func.func @transform_3(%arg0: i32) -> (i32, i32) {
    %c0_i32 = arith.constant 0 : i32
    %c0_i32_0 = arith.constant 0 : i32
    %c0_i32_1 = arith.constant 0 : i32
    return %c0_i32, %c0_i32_0 : i32, i32
  }
  func.func @transform_4(%arg0: i32) -> (i32, i32) {
    %c0_i32 = arith.constant 0 : i32
    %c0_i32_0 = arith.constant 0 : i32
    %c0_i32_1 = arith.constant 0 : i32
    return %c0_i32, %c0_i32_0 : i32, i32
  }
  func.func @transform_5(%arg0: i32) -> (i32, i32) {
    %c0_i32 = arith.constant 0 : i32
    %c0_i32_0 = arith.constant 0 : i32
    %c0_i32_1 = arith.constant 0 : i32
    return %c0_i32, %c0_i32_0 : i32, i32
  }
  func.func @transform_6(%arg0: i32) -> (i32, i32) {
    %c0_i32 = arith.constant 0 : i32
    %c0_i32_0 = arith.constant 0 : i32
    %c0_i32_1 = arith.constant 0 : i32
    return %c0_i32, %c0_i32_0 : i32, i32
  }
  func.func @transform_7(%arg0: i32) -> (i32, i32) {
    %c0_i32 = arith.constant 0 : i32
    %c0_i32_0 = arith.constant 0 : i32
    return %arg0, %c0_i32 : i32, i32
  }
}

</mosaic_0001>

<llo_original>
// kernel: actor_forward.1
$region0: #{actor_forward.1}
  #allocation0 [shape = 'u32[]', space=smem, size = 0x4, offset = 0x4, fixed_abs, tag = 'smem constant byte address 0x4 - core index']
  #allocation1 [shape = 'u32[72,128]{1,0:T(1,128)}', space=vmem, size = 0x9000, scoped, tag = 'internal scratch']
  %s0 = inlined_call_operand.vmem [shape: f32[32,8], index: 0, kind: input, shape index: {}]
  %s1 = inlined_call_operand.vmem [shape: bf16[8,512], index: 1, kind: input, shape index: {}]
  %s2 = inlined_call_operand.vmem [shape: f32[1,512], index: 2, kind: input, shape index: {}]
  %s3 = inlined_call_operand.hbm [shape: bf16[512,384], index: 3, kind: input, shape index: {}]
  %s4 = inlined_call_operand.vmem [shape: f32[1,384], index: 4, kind: input, shape index: {}]
  %s5 = inlined_call_operand.hbm [shape: bf16[384,128], index: 5, kind: input, shape index: {}]
  %s6 = inlined_call_operand.vmem [shape: f32[1,128], index: 6, kind: input, shape index: {}]
  %s7 = inlined_call_operand.vmem [shape: bf16[32,128], index: 7, kind: output, shape index: {}]
  %s8 = sld [smem:[#allocation0]]
  $region69: #{actor_forward.1} parent=0
    _
  %s10 = ssub.s32 1, %s8
  %s11 = scalar_select 0, %s10, %s8
  $region1: #{actor_forward.1} parent=0
    #allocation2 [shape = 'u8[393216]{0}', space=vmem, size = 0x60000, scoped, tag = 'input window, operand 3, single buffered']
    #allocation3 [shape = 's32[2]{0}', space=sflag, size = 0x8, scoped, tag = 'scoped memory for actor_forward.1']
    #allocation4 [shape = 'u8[98304]{0}', space=vmem, size = 0x18000, scoped, tag = 'input window, operand 5, single buffered']
    #allocation5 [shape = 's32[1]{0}', space=sflag, size = 0x4, scoped, tag = 'scoped memory for actor_forward.1']
    %12 = vsyncpa [#allocation3], 0
    %13 = vsyncpa [#allocation5], 0
    loop: start=0, step=1, limit=4
    $region2: #{actor_forward.1} parent=1 // loop_pre_header
      _
    $region3: #{actor_forward.1} parent=1 // loop_header
      %s15 = sphi 0, %s19
      %p16 = scmp.ge.s32.totalorder %s15, 4
      %s25 = sphi 0, %s27
      %s28 = sphi 0, %s25
      %s29 = sphi 0, %s28
      %s45 = sphi 0, %s29
      %s49 = sphi 0, %s49
      %s51 = sphi 0, %s49
      %s52 = sphi 0, %s51
      %s66 = sphi 0, %s52
      %s70 = sphi 0, %s70
      %s72 = sphi 0, %s70
      %s73 = sphi 0, %s72
      %s87 = sphi 0, %s73
      %s91 = sphi 0, %s91
      %s93 = sphi 0, %s91
      %s94 = sphi 0, %s93
      %s108 = sphi 0, %s94
      %s112 = sphi 0, %s112
      %s114 = sphi 0, %s112
      %s115 = sphi 0, %s114
      %s129 = sphi 0, %s115
      %s133 = sphi 0, %s133
      %s135 = sphi 0, %s133
      %s136 = sphi 0, %s135
      %s150 = sphi 0, %s136
      %s154 = sphi 0, %s154
      %s156 = sphi 0, %s154
      %s157 = sphi 0, %s156
      %s171 = sphi 0, %s157
      %s177 = sphi 0, %s179
      %s180 = sphi 0, %s177
      %s181 = sphi 0, %s180
      %s197 = sphi 0, %s181
    $region4: #{actor_forward.1} parent=1 // loop_header_branch
      %18 = sbr.rel (%p16) target = $region8
    $region5: #{actor_forward.1} parent=1 // loop_body
      %s20 = ssub.s32 %s15, 1
      %s21 = ssub.s32 %s15, 2
      %s22 = sadd.s32 %s15, 1
      %s23 = ssub.s32 %s15, %s22
      %p24 = scmp.eq.s32.totalorder %s23, 0
      %s26 = sadd.s32 %s25, 1
      %s27 = scalar_select %p24, %s25, %s26
      %p30 = pneg %p24
      %p31 = scmp.eq.s32.totalorder %s15, 1
      %p32 = por %p30, %p31
      %p33 = scmp.ne.s32.totalorder %s25, %s28
      %p34 = scmp.eq.s32.totalorder %s15, 0
      %p35 = por %p33, %p34
      %p36 = scmp.ne.s32.totalorder %s25, %s28
      %p37 = scmp.eq.s32.totalorder %s20, 1
      %p38 = por %p36, %p37
      %p39 = scmp.ne.s32.totalorder %s28, %s29
      %p40 = scmp.eq.s32.totalorder %s20, 0
      %p41 = por %p39, %p40
      %p42 = scmp.ne.s32.totalorder %s28, %s29
      %p43 = scmp.eq.s32.totalorder %s21, 1
      %p44 = por %p42, %p43
      %p46 = scmp.ne.s32.totalorder %s29, %s45
      %p47 = scmp.eq.s32.totalorder %s21, 0
      %p48 = por %p46, %p47
      %s50 = sadd.s32 %s49, 1
      %p53 = scmp.eq.s32.totalorder %s15, 1
      %p54 = scmp.ne.s32.totalorder %s49, %s51
      %p55 = scmp.eq.s32.totalorder %s15, 0
      %p56 = por %p54, %p55
      %p57 = scmp.ne.s32.totalorder %s49, %s51
      %p58 = scmp.eq.s32.totalorder %s20, 1
      %p59 = por %p57, %p58
      %p60 = scmp.ne.s32.totalorder %s51, %s52
      %p61 = scmp.eq.s32.totalorder %s20, 0
      %p62 = por %p60, %p61
      %p63 = scmp.ne.s32.totalorder %s51, %s52
      %p64 = scmp.eq.s32.totalorder %s21, 1
      %p65 = por %p63, %p64
      %p67 = scmp.ne.s32.totalorder %s52, %s66
      %p68 = scmp.eq.s32.totalorder %s21, 0
      %p69 = por %p67, %p68
      %s71 = sadd.s32 %s70, 1
      %p74 = scmp.eq.s32.totalorder %s15, 1
      %p75 = scmp.ne.s32.totalorder %s70, %s72
      %p76 = scmp.eq.s32.totalorder %s15, 0
      %p77 = por %p75, %p76
      %p78 = scmp.ne.s32.totalorder %s70, %s72
      %p79 = scmp.eq.s32.totalorder %s20, 1
      %p80 = por %p78, %p79
      %p81 = scmp.ne.s32.totalorder %s72, %s73
      %p82 = scmp.eq.s32.totalorder %s20, 0
      %p83 = por %p81, %p82
      %p84 = scmp.ne.s32.totalorder %s72, %s73
      %p85 = scmp.eq.s32.totalorder %s21, 1
      %p86 = por %p84, %p85
      %p88 = scmp.ne.s32.totalorder %s73, %s87
      %p89 = scmp.eq.s32.totalorder %s21, 0
      %p90 = por %p88, %p89
      %s92 = sadd.s32 %s91, 1
      %p95 = scmp.eq.s32.totalorder %s15, 1
      %p96 = scmp.ne.s32.totalorder %s91, %s93
      %p97 = scmp.eq.s32.totalorder %s15, 0
      %p98 = por %p96, %p97
      %p99 = scmp.ne.s32.totalorder %s91, %s93
      %p100 = scmp.eq.s32.totalorder %s20, 1
      %p101 = por %p99, %p100
      %p102 = scmp.ne.s32.totalorder %s93, %s94
      %p103 = scmp.eq.s32.totalorder %s20, 0
      %p104 = por %p102, %p103
      %p105 = scmp.ne.s32.totalorder %s93, %s94
      %p106 = scmp.eq.s32.totalorder %s21, 1
      %p107 = por %p105, %p106
      %p109 = scmp.ne.s32.totalorder %s94, %s108
      %p110 = scmp.eq.s32.totalorder %s21, 0
      %p111 = por %p109, %p110
      %s113 = sadd.s32 %s112, 1
      %p116 = scmp.eq.s32.totalorder %s15, 1
      %p117 = scmp.ne.s32.totalorder %s112, %s114
      %p118 = scmp.eq.s32.totalorder %s15, 0
      %p119 = por %p117, %p118
      %p120 = scmp.ne.s32.totalorder %s112, %s114
      %p121 = scmp.eq.s32.totalorder %s20, 1
      %p122 = por %p120, %p121
      %p123 = scmp.ne.s32.totalorder %s114, %s115
      %p124 = scmp.eq.s32.totalorder %s20, 0
      %p125 = por %p123, %p124
      %p126 = scmp.ne.s32.totalorder %s114, %s115
      %p127 = scmp.eq.s32.totalorder %s21, 1
      %p128 = por %p126, %p127
      %p130 = scmp.ne.s32.totalorder %s115, %s129
      %p131 = scmp.eq.s32.totalorder %s21, 0
      %p132 = por %p130, %p131
      %s134 = sadd.s32 %s133, 1
      %p137 = scmp.eq.s32.totalorder %s15, 1
      %p138 = scmp.ne.s32.totalorder %s133, %s135
      %p139 = scmp.eq.s32.totalorder %s15, 0
      %p140 = por %p138, %p139
      %p141 = scmp.ne.s32.totalorder %s133, %s135
      %p142 = scmp.eq.s32.totalorder %s20, 1
      %p143 = por %p141, %p142
      %p144 = scmp.ne.s32.totalorder %s135, %s136
      %p145 = scmp.eq.s32.totalorder %s20, 0
      %p146 = por %p144, %p145
      %p147 = scmp.ne.s32.totalorder %s135, %s136
      %p148 = scmp.eq.s32.totalorder %s21, 1
      %p149 = por %p147, %p148
      %p151 = scmp.ne.s32.totalorder %s136, %s150
      %p152 = scmp.eq.s32.totalorder %s21, 0
      %p153 = por %p151, %p152
      %s155 = sadd.s32 %s154, 1
      %p158 = scmp.eq.s32.totalorder %s15, 1
      %p159 = scmp.ne.s32.totalorder %s154, %s156
      %p160 = scmp.eq.s32.totalorder %s15, 0
      %p161 = por %p159, %p160
      %p162 = scmp.ne.s32.totalorder %s154, %s156
      %p163 = scmp.eq.s32.totalorder %s20, 1
      %p164 = por %p162, %p163
      %p165 = scmp.ne.s32.totalorder %s156, %s157
      %p166 = scmp.eq.s32.totalorder %s20, 0
      %p167 = por %p165, %p166
      %p168 = scmp.ne.s32.totalorder %s156, %s157
      %p169 = scmp.eq.s32.totalorder %s21, 1
      %p170 = por %p168, %p169
      %p172 = scmp.ne.s32.totalorder %s157, %s171
      %p173 = scmp.eq.s32.totalorder %s21, 0
      %p174 = por %p172, %p173
      %s175 = ssub.s32 %s15, %s22
      %p176 = scmp.eq.s32.totalorder %s175, 0
      %s178 = sadd.s32 %s177, 1
      %s179 = scalar_select %p176, %s177, %s178
      %p182 = pneg %p176
      %p183 = scmp.eq.s32.totalorder %s15, 1
      %p184 = por %p182, %p183
      %p185 = scmp.ne.s32.totalorder %s177, %s180
      %p186 = scmp.eq.s32.totalorder %s15, 0
      %p187 = por %p185, %p186
      %p188 = scmp.ne.s32.totalorder %s177, %s180
      %p189 = scmp.eq.s32.totalorder %s20, 1
      %p190 = por %p188, %p189
      %p191 = scmp.ne.s32.totalorder %s180, %s181
      %p192 = scmp.eq.s32.totalorder %s20, 0
      %p193 = por %p191, %p192
      %p194 = scmp.ne.s32.totalorder %s180, %s181
      %p195 = scmp.eq.s32.totalorder %s21, 1
      %p196 = por %p194, %p195
      %p198 = scmp.ne.s32.totalorder %s181, %s197
      %p199 = scmp.eq.s32.totalorder %s21, 0
      %p200 = por %p198, %p199
      %p201 = scmp.le.s32.totalorder 1, %s15
      %p202 = scmp.lt.s32.totalorder %s15, 3
      %p203 = pnand %p201, %p202
      %p204 = pneg %p203
      // Predicated region
      $region9: #{actor_forward.1} parent=5 // pred_check
        _
      $region10: #{actor_forward.1} parent=5 // pred_check_branch
        %206 = sbr.rel (%p203) target = $region12
      $region11: #{actor_forward.1} parent=5 // pred_region
        %s207 = ssub.s32 %s15, 1
        // Predicated region
        $region13: #{actor_forward.1} parent=11 // pred_check
          %p208 = pneg %p62
        $region14: #{actor_forward.1} parent=11 // pred_check_branch
          %210 = sbr.rel (%p208) target = $region16
        $region15: #{actor_forward.1} parent=11 // pred_region
          _
        $region16: #{actor_forward.1} parent=11 // pred_fallthru
          _
        // Predicated region
        $region17: #{actor_forward.1} parent=11 // pred_check
          %p211 = pneg %p83
        $region18: #{actor_forward.1} parent=11 // pred_check_branch
          %213 = sbr.rel (%p211) target = $region20
        $region19: #{actor_forward.1} parent=11 // pred_region
          _
        $region20: #{actor_forward.1} parent=11 // pred_fallthru
          _
        // Predicated region
        $region21: #{actor_forward.1} parent=11 // pred_check
          %p214 = pneg %p104
        $region22: #{actor_forward.1} parent=11 // pred_check_branch
          %216 = sbr.rel (%p214) target = $region24
        $region23: #{actor_forward.1} parent=11 // pred_region
          %218 = vsyncadd [#allocation3], 0
          %s219 = sshll.u32 %s3, 4
          %s220 = int_to_ptr.hbm [resolvable:$true] %s219
          %s221 = sshll.u32 [#allocation2], 4
          %s222 = int_to_ptr.vmem [resolvable:$true] %s221
          %227 = dma.hbm_to_vmem [thread:$0]  %s220, 12288, %s222, [#allocation3], 192, 192, 12
        $region24: #{actor_forward.1} parent=11 // pred_fallthru
          _
        // Predicated region
        $region25: #{actor_forward.1} parent=11 // pred_check
          %p228 = pneg %p125
        $region26: #{actor_forward.1} parent=11 // pred_check_branch
          %230 = sbr.rel (%p228) target = $region28
        $region27: #{actor_forward.1} parent=11 // pred_region
          _
        $region28: #{actor_forward.1} parent=11 // pred_fallthru
          _
        // Predicated region
        $region29: #{actor_forward.1} parent=11 // pred_check
          %p231 = pneg %p146
        $region30: #{actor_forward.1} parent=11 // pred_check_branch
          %233 = sbr.rel (%p231) target = $region32
        $region31: #{actor_forward.1} parent=11 // pred_region
          %235 = vsyncadd [#allocation5], 0
          %s236 = sshll.u32 %s5, 4
          %s237 = int_to_ptr.hbm [resolvable:$true] %s236
          %s238 = sshll.u32 [#allocation4], 4
          %s239 = int_to_ptr.vmem [resolvable:$true] %s238
          %244 = dma.hbm_to_vmem [thread:$0]  %s237, 3072, %s239, [#allocation5], 64, 64, 4
        $region32: #{actor_forward.1} parent=11 // pred_fallthru
          _
        // Predicated region
        $region33: #{actor_forward.1} parent=11 // pred_check
          %p245 = pneg %p167
        $region34: #{actor_forward.1} parent=11 // pred_check_branch
          %247 = sbr.rel (%p245) target = $region36
        $region35: #{actor_forward.1} parent=11 // pred_region
          _
        $region36: #{actor_forward.1} parent=11 // pred_fallthru
          _
      $region12: #{actor_forward.1} parent=5 // pred_fallthru
        _
      %p248 = scmp.lt.s32.totalorder %s15, 2
      // Predicated region
      $region37: #{actor_forward.1} parent=5 // pred_check
        %p249 = pneg %p248
      $region38: #{actor_forward.1} parent=5 // pred_check_branch
        %251 = sbr.rel (%p249) target = $region40
      $region39: #{actor_forward.1} parent=5 // pred_region
        // Predicated region
        $region41: #{actor_forward.1} parent=39 // pred_check
          %p252 = pneg %p35
        $region42: #{actor_forward.1} parent=39 // pred_check_branch
          %254 = sbr.rel (%p252) target = $region44
        $region43: #{actor_forward.1} parent=39 // pred_region
          %s255 = smul.u32 2, %s15
          %p256 = scmp.lt.s32.totalorder %s255, 3
          %s257 = scalar_select %p256, %s255, 3
          %s258 = smul.addr %s257, 8
          %s259 = scalar_lea.vmem %s0, %s258
          %s260 = smul.u32 2, %s15
        $region44: #{actor_forward.1} parent=39 // pred_fallthru
          _
      $region40: #{actor_forward.1} parent=5 // pred_fallthru
        _
      %p261 = scmp.le.s32.totalorder 1, %s15
      %p262 = scmp.lt.s32.totalorder %s15, 3
      %p263 = pnand %p261, %p262
      %p264 = pneg %p263
      // Predicated region
      $region45: #{actor_forward.1} parent=5 // pred_check
        _
      $region46: #{actor_forward.1} parent=5 // pred_check_branch
        %266 = sbr.rel (%p263) target = $region48
      $region47: #{actor_forward.1} parent=5 // pred_region
        %s267 = ssub.s32 %s15, 1
        // Predicated region
        $region49: #{actor_forward.1} parent=47 // pred_check
          %p268 = pneg %p104
        $region50: #{actor_forward.1} parent=47 // pred_check_branch
          %270 = sbr.rel (%p268) target = $region52
        $region51: #{actor_forward.1} parent=47 // pred_region
          %272 = dma.done [#allocation3], 12288
        $region52: #{actor_forward.1} parent=47 // pred_fallthru
          _
        // Predicated region
        $region53: #{actor_forward.1} parent=47 // pred_check
          %p273 = pneg %p146
        $region54: #{actor_forward.1} parent=47 // pred_check_branch
          %275 = sbr.rel (%p273) target = $region56
        $region55: #{actor_forward.1} parent=47 // pred_region
          %277 = dma.done [#allocation5], 3072
        $region56: #{actor_forward.1} parent=47 // pred_fallthru
          _
        %s278 = smul.u32 2, %s20
        %p279 = scmp.lt.s32.totalorder %s278, 3
        %s280 = scalar_select %p279, %s278, 3
        %s281 = smul.addr %s280, 8
        %s282 = scalar_lea.vmem %s0, %s281
        %p283 = pneg %p41
        %p284 = pneg %p38
        %p285 = pneg %p62
        %p286 = pneg %p59
        %p287 = pneg %p83
        %p288 = pneg %p80
        %p289 = pneg %p104
        %p290 = pneg %p101
        %p291 = pneg %p125
        %p292 = pneg %p122
        %p293 = pneg %p146
        %p294 = pneg %p143
        %p295 = pneg %p167
        %p296 = pneg %p164
        %p297 = pneg %p193
        %p298 = pneg %p190
        %s299 = smul.u32 2, %s20
        %p300 = scmp.lt.s32.totalorder %s299, 3
        %s301 = scalar_select %p300, %s299, 3
        %s302 = smul.addr %s301, 4
        %s303 = scalar_lea.vmem %s7, %s302
        %s304 = smul.u32 2, %s20
        %p305 = scmp.lt.s32.totalorder %s304, 3
        %s306 = scalar_select %p305, %s304, 3
        %s307 = smul.addr %s306, 8
        %s308 = scalar_lea.vmem %s0, %s307
        %s309 = smul.u32 2, %s20
        %s310 = smul.u32 2, %s20
        %p311 = scmp.lt.s32.totalorder %s310, 3
        %s312 = scalar_select %p311, %s310, 3
        %s313 = smul.addr %s312, 4
        %s314 = scalar_lea.vmem %s7, %s313
        %s315 = smul.u32 2, %s20
        %v317 = vld [vmem:[%s308] sm:$0xff]
        %v318 = vld [vmem:[%s308 + $0x8] sm:$0xff]
        %v319 = vpack.c.bf16 %v318, %v317
        %v320 = vld [vmem:[%s1] sm:$0xff]
        %v321 = vld [vmem:[%s1 + $0x8] sm:$0xff]
        %v322 = vld [vmem:[%s2] sm:$0xf]
        %v324 = vperm.slane %v322, 0
        %v325 = vperm.slane %v322, 1
        %v326 = vperm.slane %v322, 2
        %v327 = vperm.slane %v322, 3
        %v334 = vunpack.c.l.b16 %v320
        %v335 = vunpack.c.h.b16 %v320
        %v336 = vunpack.c.l.b16 %v321
        %v337 = vunpack.c.h.b16 %v321
        %v338 = vpack.c.b16 %v334, %v334
        %v339 = vpack.c.b16 %v335, %v335
        %v340 = vpack.c.b16 %v336, %v336
        %v341 = vpack.c.b16 %v337, %v337
        %vm342 = vcmask 64512
        %v344 = vsel %vm342, %v319, 0
        %vm346 = vcmask 1043456
        %v348 = vsel %vm346, %v338, 0
        %v351 = vsel %vm346, %v339, 0
        %v354 = vsel %vm346, %v340, 0
        %v357 = vsel %vm346, %v341, 0
        %359 = vmatpush.bf16.msra.mxu0 0
        %360 = vmatpush.bf16.msra.mxu0 0
        %361 = vmatpush.bf16.msra.mxu0 0
        %362 = vmatpush.bf16.msra.mxu0 0
        %363 = vmatpush.bf16.msra.mxu0 0
        %364 = vmatpush.bf16.msra.mxu0 0
        %365 = vmatpush.bf16.msra.mxu0 0
        %366 = vmatpush.bf16.msra.mxu0 %v348
        %367 = vmatmul.bf16.gmra.mxu0 %v344
        %v368 = vpop.f32.mrf.mxu0
        %v369 = vadd.f32 %v324, %v368
        %v370 = vpop.f32.mrf.mxu0
        %v371 = vadd.f32 %v324, %v370
        %372 = vdwg.mxu0
        %373 = vmatpush.bf16.msra.mxu0 0
        %374 = vmatpush.bf16.msra.mxu0 0
        %375 = vmatpush.bf16.msra.mxu0 0
        %376 = vmatpush.bf16.msra.mxu0 0
        %377 = vmatpush.bf16.msra.mxu0 0
        %378 = vmatpush.bf16.msra.mxu0 0
        %379 = vmatpush.bf16.msra.mxu0 0
        %380 = vmatpush.bf16.msra.mxu0 %v351
        %381 = vmatmul.bf16.gmra.mxu0 %v344
        %v382 = vpop.f32.mrf.mxu0
        %v383 = vadd.f32 %v325, %v382
        %v384 = vpop.f32.mrf.mxu0
        %v385 = vadd.f32 %v325, %v384
        %386 = vdwg.mxu0
        %387 = vmatpush.bf16.msra.mxu0 0
        %388 = vmatpush.bf16.msra.mxu0 0
        %389 = vmatpush.bf16.msra.mxu0 0
        %390 = vmatpush.bf16.msra.mxu0 0
        %391 = vmatpush.bf16.msra.mxu0 0
        %392 = vmatpush.bf16.msra.mxu0 0
        %393 = vmatpush.bf16.msra.mxu0 0
        %394 = vmatpush.bf16.msra.mxu0 %v354
        %395 = vmatmul.bf16.gmra.mxu0 %v344
        %v396 = vpop.f32.mrf.mxu0
        %v397 = vadd.f32 %v326, %v396
        %v398 = vpop.f32.mrf.mxu0
        %v399 = vadd.f32 %v326, %v398
        %400 = vdwg.mxu0
        %401 = vmatpush.bf16.msra.mxu0 0
        %402 = vmatpush.bf16.msra.mxu0 0
        %403 = vmatpush.bf16.msra.mxu0 0
        %404 = vmatpush.bf16.msra.mxu0 0
        %405 = vmatpush.bf16.msra.mxu0 0
        %406 = vmatpush.bf16.msra.mxu0 0
        %407 = vmatpush.bf16.msra.mxu0 0
        %408 = vmatpush.bf16.msra.mxu0 %v357
        %409 = vmatmul.bf16.gmra.mxu0 %v344
        %v410 = vpop.f32.mrf.mxu0
        %v411 = vadd.f32 %v327, %v410
        %v412 = vpop.f32.mrf.mxu0
        %v413 = vadd.f32 %v327, %v412
        %414 = vdwg.mxu0
        %v415 = vmax.f32 %v369, 0.0
        %v416 = vmax.f32 %v383, 0.0
        %v417 = vmax.f32 %v397, 0.0
        %v418 = vmax.f32 %v411, 0.0
        %v419 = vmax.f32 %v371, 0.0
        %v420 = vmax.f32 %v385, 0.0
        %v421 = vmax.f32 %v399, 0.0
        %v422 = vmax.f32 %v413, 0.0
        %v423 = vpack.c.bf16 %v419, %v415
        %v424 = vpack.c.bf16 %v420, %v416
        %v425 = vpack.c.bf16 %v421, %v417
        %v426 = vpack.c.bf16 %v422, %v418
        %v427 = vld [vmem:[#allocation2] sm:$0xff]
        %v428 = vld [vmem:[#allocation2 + $0x8] sm:$0xf]
        %v429 = vld [vmem:[#allocation2 + $0xc] sm:$0xff]
        %v430 = vld [vmem:[#allocation2 + $0x14] sm:$0xf]
        %v431 = vld [vmem:[#allocation2 + $0x18] sm:$0xff]
        %v432 = vld [vmem:[#allocation2 + $0x20] sm:$0xf]
        %v433 = vld [vmem:[#allocation2 + $0x24] sm:$0xff]
        %v434 = vld [vmem:[#allocation2 + $0x2c] sm:$0xf]
        %v435 = vld [vmem:[#allocation2 + $0x30] sm:$0xff]
        %v436 = vld [vmem:[#allocation2 + $0x38] sm:$0xf]
        %v437 = vld [vmem:[#allocation2 + $0x3c] sm:$0xff]
        %v438 = vld [vmem:[#allocation2 + $0x44] sm:$0xf]
        %v439 = vld [vmem:[#allocation2 + $0x48] sm:$0xff]
        %v440 = vld [vmem:[#allocation2 + $0x50] sm:$0xf]
        %v441 = vld [vmem:[#allocation2 + $0x54] sm:$0xff]
        %v442 = vld [vmem:[#allocation2 + $0x5c] sm:$0xf]
        %v443 = vld [vmem:[#allocation2 + $0x60] sm:$0xff]
        %v444 = vld [vmem:[#allocation2 + $0x68] sm:$0xf]
        %v445 = vld [vmem:[#allocation2 + $0x6c] sm:$0xff]
        %v446 = vld [vmem:[#allocation2 + $0x74] sm:$0xf]
        %v447 = vld [vmem:[#allocation2 + $0x78] sm:$0xff]
        %v448 = vld [vmem:[#allocation2 + $0x80] sm:$0xf]
        %v449 = vld [vmem:[#allocation2 + $0x84] sm:$0xff]
        %v450 = vld [vmem:[#allocation2 + $0x8c] sm:$0xf]
        %v451 = vld [vmem:[#allocation2 + $0x90] sm:$0xff]
        %v452 = vld [vmem:[#allocation2 + $0x98] sm:$0xf]
        %v453 = vld [vmem:[#allocation2 + $0x9c] sm:$0xff]
        %v454 = vld [vmem:[#allocation2 + $0xa4] sm:$0xf]
        %v455 = vld [vmem:[#allocation2 + $0xa8] sm:$0xff]
        %v456 = vld [vmem:[#allocation2 + $0xb0] sm:$0xf]
        %v457 = vld [vmem:[#allocation2 + $0xb4] sm:$0xff]
        %v458 = vld [vmem:[#allocation2 + $0xbc] sm:$0xf]
        %v459 = vld [vmem:[#allocation2 + $0xc0] sm:$0xff]
        %v460 = vld [vmem:[#allocation2 + $0xc8] sm:$0xf]
        %v461 = vld [vmem:[#allocation2 + $0xcc] sm:$0xff]
        %v462 = vld [vmem:[#allocation2 + $0xd4] sm:$0xf]
        %v463 = vld [vmem:[#allocation2 + $0xd8] sm:$0xff]
        %v464 = vld [vmem:[#allocation2 + $0xe0] sm:$0xf]
        %v465 = vld [vmem:[#allocation2 + $0xe4] sm:$0xff]
        %v466 = vld [vmem:[#allocation2 + $0xec] sm:$0xf]
        %v467 = vld [vmem:[#allocation2 + $0xf0] sm:$0xff]
        %v468 = vld [vmem:[#allocation2 + $0xf8] sm:$0xf]
        %v469 = vld [vmem:[#allocation2 + $0xfc] sm:$0xff]
        %v470 = vld [vmem:[#allocation2 + $0x104] sm:$0xf]
        %v471 = vld [vmem:[#allocation2 + $0x108] sm:$0xff]
        %v472 = vld [vmem:[#allocation2 + $0x110] sm:$0xf]
        %v473 = vld [vmem:[#allocation2 + $0x114] sm:$0xff]
        %v474 = vld [vmem:[#allocation2 + $0x11c] sm:$0xf]
        %v475 = vld [vmem:[#allocation2 + $0x120] sm:$0xff]
        %v476 = vld [vmem:[#allocation2 + $0x128] sm:$0xf]
        %v477 = vld [vmem:[#allocation2 + $0x12c] sm:$0xff]
        %v478 = vld [vmem:[#allocation2 + $0x134] sm:$0xf]
        %v479 = vld [vmem:[#allocation2 + $0x138] sm:$0xff]
        %v480 = vld [vmem:[#allocation2 + $0x140] sm:$0xf]
        %v481 = vld [vmem:[#allocation2 + $0x144] sm:$0xff]
        %v482 = vld [vmem:[#allocation2 + $0x14c] sm:$0xf]
        %v483 = vld [vmem:[#allocation2 + $0x150] sm:$0xff]
        %v484 = vld [vmem:[#allocation2 + $0x158] sm:$0xf]
        %v485 = vld [vmem:[#allocation2 + $0x15c] sm:$0xff]
        %v486 = vld [vmem:[#allocation2 + $0x164] sm:$0xf]
        %v487 = vld [vmem:[#allocation2 + $0x168] sm:$0xff]
        %v488 = vld [vmem:[#allocation2 + $0x170] sm:$0xf]
        %v489 = vld [vmem:[#allocation2 + $0x174] sm:$0xff]
        %v490 = vld [vmem:[#allocation2 + $0x17c] sm:$0xf]
        %v491 = vld [vmem:[#allocation2 + $0x180] sm:$0xff]
        %v492 = vld [vmem:[#allocation2 + $0x188] sm:$0xf]
        %v493 = vld [vmem:[#allocation2 + $0x18c] sm:$0xff]
        %v494 = vld [vmem:[#allocation2 + $0x194] sm:$0xf]
        %v495 = vld [vmem:[#allocation2 + $0x198] sm:$0xff]
        %v496 = vld [vmem:[#allocation2 + $0x1a0] sm:$0xf]
        %v497 = vld [vmem:[#allocation2 + $0x1a4] sm:$0xff]
        %v498 = vld [vmem:[#allocation2 + $0x1ac] sm:$0xf]
        %v499 = vld [vmem:[#allocation2 + $0x1b0] sm:$0xff]
        %v500 = vld [vmem:[#allocation2 + $0x1b8] sm:$0xf]
        %v501 = vld [vmem:[#allocation2 + $0x1bc] sm:$0xff]
        %v502 = vld [vmem:[#allocation2 + $0x1c4] sm:$0xf]
        %v503 = vld [vmem:[#allocation2 + $0x1c8] sm:$0xff]
        %v504 = vld [vmem:[#allocation2 + $0x1d0] sm:$0xf]
        %v505 = vld [vmem:[#allocation2 + $0x1d4] sm:$0xff]
        %v506 = vld [vmem:[#allocation2 + $0x1dc] sm:$0xf]
        %v507 = vld [vmem:[#allocation2 + $0x1e0] sm:$0xff]
        %v508 = vld [vmem:[#allocation2 + $0x1e8] sm:$0xf]
        %v509 = vld [vmem:[#allocation2 + $0x1ec] sm:$0xff]
        %v510 = vld [vmem:[#allocation2 + $0x1f4] sm:$0xf]
        %v511 = vld [vmem:[#allocation2 + $0x1f8] sm:$0xff]
        %v512 = vld [vmem:[#allocation2 + $0x200] sm:$0xf]
        %v513 = vld [vmem:[#allocation2 + $0x204] sm:$0xff]
        %v514 = vld [vmem:[#allocation2 + $0x20c] sm:$0xf]
        %v515 = vld [vmem:[#allocation2 + $0x210] sm:$0xff]
        %v516 = vld [vmem:[#allocation2 + $0x218] sm:$0xf]
        %v517 = vld [vmem:[#allocation2 + $0x21c] sm:$0xff]
        %v518 = vld [vmem:[#allocation2 + $0x224] sm:$0xf]
        %v519 = vld [vmem:[#allocation2 + $0x228] sm:$0xff]
        %v520 = vld [vmem:[#allocation2 + $0x230] sm:$0xf]
        %v521 = vld [vmem:[#allocation2 + $0x234] sm:$0xff]
        %v522 = vld [vmem:[#allocation2 + $0x23c] sm:$0xf]
        %v523 = vld [vmem:[#allocation2 + $0x240] sm:$0xff]
        %v524 = vld [vmem:[#allocation2 + $0x248] sm:$0xf]
        %v525 = vld [vmem:[#allocation2 + $0x24c] sm:$0xff]
        %v526 = vld [vmem:[#allocation2 + $0x254] sm:$0xf]
        %v527 = vld [vmem:[#allocation2 + $0x258] sm:$0xff]
        %v528 = vld [vmem:[#allocation2 + $0x260] sm:$0xf]
        %v529 = vld [vmem:[#allocation2 + $0x264] sm:$0xff]
        %v530 = vld [vmem:[#allocation2 + $0x26c] sm:$0xf]
        %v531 = vld [vmem:[#allocation2 + $0x270] sm:$0xff]
        %v532 = vld [vmem:[#allocation2 + $0x278] sm:$0xf]
        %v533 = vld [vmem:[#allocation2 + $0x27c] sm:$0xff]
        %v534 = vld [vmem:[#allocation2 + $0x284] sm:$0xf]
        %v535 = vld [vmem:[#allocation2 + $0x288] sm:$0xff]
        %v536 = vld [vmem:[#allocation2 + $0x290] sm:$0xf]
        %v537 = vld [vmem:[#allocation2 + $0x294] sm:$0xff]
        %v538 = vld [vmem:[#allocation2 + $0x29c] sm:$0xf]
        %v539 = vld [vmem:[#allocation2 + $0x2a0] sm:$0xff]
        %v540 = vld [vmem:[#allocation2 + $0x2a8] sm:$0xf]
        %v541 = vld [vmem:[#allocation2 + $0x2ac] sm:$0xff]
        %v542 = vld [vmem:[#allocation2 + $0x2b4] sm:$0xf]
        %v543 = vld [vmem:[#allocation2 + $0x2b8] sm:$0xff]
        %v544 = vld [vmem:[#allocation2 + $0x2c0] sm:$0xf]
        %v545 = vld [vmem:[#allocation2 + $0x2c4] sm:$0xff]
        %v546 = vld [vmem:[#allocation2 + $0x2cc] sm:$0xf]
        %v547 = vld [vmem:[#allocation2 + $0x2d0] sm:$0xff]
        %v548 = vld [vmem:[#allocation2 + $0x2d8] sm:$0xf]
        %v549 = vld [vmem:[#allocation2 + $0x2dc] sm:$0xff]
        %v550 = vld [vmem:[#allocation2 + $0x2e4] sm:$0xf]
        %v551 = vld [vmem:[#allocation2 + $0x2e8] sm:$0xff]
        %v552 = vld [vmem:[#allocation2 + $0x2f0] sm:$0xf]
        %v553 = vld [vmem:[#allocation2 + $0x2f4] sm:$0xff]
        %v554 = vld [vmem:[#allocation2 + $0x2fc] sm:$0xf]
        %v555 = vld [vmem:[%s4] sm:$0x7]
        %v557 = vperm.slane %v555, 0
        %v558 = vperm.slane %v555, 1
        %v559 = vperm.slane %v555, 2
        %v691 = vunpack.c.l.b16 %v427
        %v692 = vunpack.c.h.b16 %v427
        %v693 = vunpack.c.l.b16 %v428
        %v694 = vunpack.c.l.b16 %v429
        %v695 = vunpack.c.h.b16 %v429
        %v696 = vunpack.c.l.b16 %v430
        %v697 = vunpack.c.l.b16 %v431
        %v698 = vunpack.c.h.b16 %v431
        %v699 = vunpack.c.l.b16 %v432
        %v700 = vunpack.c.l.b16 %v433
        %v701 = vunpack.c.h.b16 %v433
        %v702 = vunpack.c.l.b16 %v434
        %v703 = vunpack.c.l.b16 %v435
        %v704 = vunpack.c.h.b16 %v435
        %v705 = vunpack.c.l.b16 %v436
        %v706 = vunpack.c.l.b16 %v437
        %v707 = vunpack.c.h.b16 %v437
        %v708 = vunpack.c.l.b16 %v438
        %v709 = vunpack.c.l.b16 %v439
        %v710 = vunpack.c.h.b16 %v439
        %v711 = vunpack.c.l.b16 %v440
        %v712 = vunpack.c.l.b16 %v441
        %v713 = vunpack.c.h.b16 %v441
        %v714 = vunpack.c.l.b16 %v442
        %v715 = vunpack.c.l.b16 %v443
        %v716 = vunpack.c.h.b16 %v443
        %v717 = vunpack.c.l.b16 %v444
        %v718 = vunpack.c.l.b16 %v445
        %v719 = vunpack.c.h.b16 %v445
        %v720 = vunpack.c.l.b16 %v446
        %v721 = vunpack.c.l.b16 %v447
        %v722 = vunpack.c.h.b16 %v447
        %v723 = vunpack.c.l.b16 %v448
        %v724 = vunpack.c.l.b16 %v449
        %v725 = vunpack.c.h.b16 %v449
        %v726 = vunpack.c.l.b16 %v450
        %v727 = vunpack.c.l.b16 %v451
        %v728 = vunpack.c.h.b16 %v451
        %v729 = vunpack.c.l.b16 %v452
        %v730 = vunpack.c.l.b16 %v453
        %v731 = vunpack.c.h.b16 %v453
        %v732 = vunpack.c.l.b16 %v454
        %v733 = vunpack.c.l.b16 %v455
        %v734 = vunpack.c.h.b16 %v455
        %v735 = vunpack.c.l.b16 %v456
        %v736 = vunpack.c.l.b16 %v457
        %v737 = vunpack.c.h.b16 %v457
        %v738 = vunpack.c.l.b16 %v458
        %v739 = vunpack.c.l.b16 %v459
        %v740 = vunpack.c.h.b16 %v459
        %v741 = vunpack.c.l.b16 %v460
        %v742 = vunpack.c.l.b16 %v461
        %v743 = vunpack.c.h.b16 %v461
        %v744 = vunpack.c.l.b16 %v462
        %v745 = vunpack.c.l.b16 %v463
        %v746 = vunpack.c.h.b16 %v463
        %v747 = vunpack.c.l.b16 %v464
        %v748 = vunpack.c.l.b16 %v465
        %v749 = vunpack.c.h.b16 %v465
        %v750 = vunpack.c.l.b16 %v466
        %v751 = vunpack.c.l.b16 %v467
        %v752 = vunpack.c.h.b16 %v467
        %v753 = vunpack.c.l.b16 %v468
        %v754 = vunpack.c.l.b16 %v469
        %v755 = vunpack.c.h.b16 %v469
        %v756 = vunpack.c.l.b16 %v470
        %v757 = vunpack.c.l.b16 %v471
        %v758 = vunpack.c.h.b16 %v471
        %v759 = vunpack.c.l.b16 %v472
        %v760 = vunpack.c.l.b16 %v473
        %v761 = vunpack.c.h.b16 %v473
        %v762 = vunpack.c.l.b16 %v474
        %v763 = vunpack.c.l.b16 %v475
        %v764 = vunpack.c.h.b16 %v475
        %v765 = vunpack.c.l.b16 %v476
        %v766 = vunpack.c.l.b16 %v477
        %v767 = vunpack.c.h.b16 %v477
        %v768 = vunpack.c.l.b16 %v478
        %v769 = vunpack.c.l.b16 %v479
        %v770 = vunpack.c.h.b16 %v479
        %v771 = vunpack.c.l.b16 %v480
        %v772 = vunpack.c.l.b16 %v481
        %v773 = vunpack.c.h.b16 %v481
        %v774 = vunpack.c.l.b16 %v482
        %v775 = vunpack.c.l.b16 %v483
        %v776 = vunpack.c.h.b16 %v483
        %v777 = vunpack.c.l.b16 %v484
        %v778 = vunpack.c.l.b16 %v485
        %v779 = vunpack.c.h.b16 %v485
        %v780 = vunpack.c.l.b16 %v486
        %v781 = vunpack.c.l.b16 %v487
        %v782 = vunpack.c.h.b16 %v487
        %v783 = vunpack.c.l.b16 %v488
        %v784 = vunpack.c.l.b16 %v489
        %v785 = vunpack.c.h.b16 %v489
        %v786 = vunpack.c.l.b16 %v490
        %v787 = vunpack.c.l.b16 %v491
        %v788 = vunpack.c.h.b16 %v491
        %v789 = vunpack.c.l.b16 %v492
        %v790 = vunpack.c.l.b16 %v493
        %v791 = vunpack.c.h.b16 %v493
        %v792 = vunpack.c.l.b16 %v494
        %v793 = vunpack.c.l.b16 %v495
        %v794 = vunpack.c.h.b16 %v495
        %v795 = vunpack.c.l.b16 %v496
        %v796 = vunpack.c.l.b16 %v497
        %v797 = vunpack.c.h.b16 %v497
        %v798 = vunpack.c.l.b16 %v498
        %v799 = vunpack.c.l.b16 %v499
        %v800 = vunpack.c.h.b16 %v499
        %v801 = vunpack.c.l.b16 %v500
        %v802 = vunpack.c.l.b16 %v501
        %v803 = vunpack.c.h.b16 %v501
        %v804 = vunpack.c.l.b16 %v502
        %v805 = vunpack.c.l.b16 %v503
        %v806 = vunpack.c.h.b16 %v503
        %v807 = vunpack.c.l.b16 %v504
        %v808 = vunpack.c.l.b16 %v505
        %v809 = vunpack.c.h.b16 %v505
        %v810 = vunpack.c.l.b16 %v506
        %v811 = vunpack.c.l.b16 %v507
        %v812 = vunpack.c.h.b16 %v507
        %v813 = vunpack.c.l.b16 %v508
        %v814 = vunpack.c.l.b16 %v509
        %v815 = vunpack.c.h.b16 %v509
        %v816 = vunpack.c.l.b16 %v510
        %v817 = vunpack.c.l.b16 %v511
        %v818 = vunpack.c.h.b16 %v511
        %v819 = vunpack.c.l.b16 %v512
        %v820 = vunpack.c.l.b16 %v513
        %v821 = vunpack.c.h.b16 %v513
        %v822 = vunpack.c.l.b16 %v514
        %v823 = vunpack.c.l.b16 %v515
        %v824 = vunpack.c.h.b16 %v515
        %v825 = vunpack.c.l.b16 %v516
        %v826 = vunpack.c.l.b16 %v517
        %v827 = vunpack.c.h.b16 %v517
        %v828 = vunpack.c.l.b16 %v518
        %v829 = vunpack.c.l.b16 %v519
        %v830 = vunpack.c.h.b16 %v519
        %v831 = vunpack.c.l.b16 %v520
        %v832 = vunpack.c.l.b16 %v521
        %v833 = vunpack.c.h.b16 %v521
        %v834 = vunpack.c.l.b16 %v522
        %v835 = vunpack.c.l.b16 %v523
        %v836 = vunpack.c.h.b16 %v523
        %v837 = vunpack.c.l.b16 %v524
        %v838 = vunpack.c.l.b16 %v525
        %v839 = vunpack.c.h.b16 %v525
        %v840 = vunpack.c.l.b16 %v526
        %v841 = vunpack.c.l.b16 %v527
        %v842 = vunpack.c.h.b16 %v527
        %v843 = vunpack.c.l.b16 %v528
        %v844 = vunpack.c.l.b16 %v529
        %v845 = vunpack.c.h.b16 %v529
        %v846 = vunpack.c.l.b16 %v530
        %v847 = vunpack.c.l.b16 %v531
        %v848 = vunpack.c.h.b16 %v531
        %v849 = vunpack.c.l.b16 %v532
        %v850 = vunpack.c.l.b16 %v533
        %v851 = vunpack.c.h.b16 %v533
        %v852 = vunpack.c.l.b16 %v534
        %v853 = vunpack.c.l.b16 %v535
        %v854 = vunpack.c.h.b16 %v535
        %v855 = vunpack.c.l.b16 %v536
        %v856 = vunpack.c.l.b16 %v537
        %v857 = vunpack.c.h.b16 %v537
        %v858 = vunpack.c.l.b16 %v538
        %v859 = vunpack.c.l.b16 %v539
        %v860 = vunpack.c.h.b16 %v539
        %v861 = vunpack.c.l.b16 %v540
        %v862 = vunpack.c.l.b16 %v541
        %v863 = vunpack.c.h.b16 %v541
        %v864 = vunpack.c.l.b16 %v542
        %v865 = vunpack.c.l.b16 %v543
        %v866 = vunpack.c.h.b16 %v543
        %v867 = vunpack.c.l.b16 %v544
        %v868 = vunpack.c.l.b16 %v545
        %v869 = vunpack.c.h.b16 %v545
        %v870 = vunpack.c.l.b16 %v546
        %v871 = vunpack.c.l.b16 %v547
        %v872 = vunpack.c.h.b16 %v547
        %v873 = vunpack.c.l.b16 %v548
        %v874 = vunpack.c.l.b16 %v549
        %v875 = vunpack.c.h.b16 %v549
        %v876 = vunpack.c.l.b16 %v550
        %v877 = vunpack.c.l.b16 %v551
        %v878 = vunpack.c.h.b16 %v551
        %v879 = vunpack.c.l.b16 %v552
        %v880 = vunpack.c.l.b16 %v553
        %v881 = vunpack.c.h.b16 %v553
        %v882 = vunpack.c.l.b16 %v554
        %v883 = vpack.c.b16 %v694, %v691
        %v884 = vpack.c.b16 %v695, %v692
        %v885 = vpack.c.b16 %v696, %v693
        %v886 = vpack.c.b16 %v700, %v697
        %v887 = vpack.c.b16 %v701, %v698
        %v888 = vpack.c.b16 %v702, %v699
        %v889 = vpack.c.b16 %v706, %v703
        %v890 = vpack.c.b16 %v707, %v704
        %v891 = vpack.c.b16 %v708, %v705
        %v892 = vpack.c.b16 %v712, %v709
        %v893 = vpack.c.b16 %v713, %v710
        %v894 = vpack.c.b16 %v714, %v711
        %v895 = vpack.c.b16 %v718, %v715
        %v896 = vpack.c.b16 %v719, %v716
        %v897 = vpack.c.b16 %v720, %v717
        %v898 = vpack.c.b16 %v724, %v721
        %v899 = vpack.c.b16 %v725, %v722
        %v900 = vpack.c.b16 %v726, %v723
        %v901 = vpack.c.b16 %v730, %v727
        %v902 = vpack.c.b16 %v731, %v728
        %v903 = vpack.c.b16 %v732, %v729
        %v904 = vpack.c.b16 %v736, %v733
        %v905 = vpack.c.b16 %v737, %v734
        %v906 = vpack.c.b16 %v738, %v735
        %v907 = vpack.c.b16 %v742, %v739
        %v908 = vpack.c.b16 %v743, %v740
        %v909 = vpack.c.b16 %v744, %v741
        %v910 = vpack.c.b16 %v748, %v745
        %v911 = vpack.c.b16 %v749, %v746
        %v912 = vpack.c.b16 %v750, %v747
        %v913 = vpack.c.b16 %v754, %v751
        %v914 = vpack.c.b16 %v755, %v752
        %v915 = vpack.c.b16 %v756, %v753
        %v916 = vpack.c.b16 %v760, %v757
        %v917 = vpack.c.b16 %v761, %v758
        %v918 = vpack.c.b16 %v762, %v759
        %v919 = vpack.c.b16 %v766, %v763
        %v920 = vpack.c.b16 %v767, %v764
        %v921 = vpack.c.b16 %v768, %v765
        %v922 = vpack.c.b16 %v772, %v769
        %v923 = vpack.c.b16 %v773, %v770
        %v924 = vpack.c.b16 %v774, %v771
        %v925 = vpack.c.b16 %v778, %v775
        %v926 = vpack.c.b16 %v779, %v776
        %v927 = vpack.c.b16 %v780, %v777
        %v928 = vpack.c.b16 %v784, %v781
        %v929 = vpack.c.b16 %v785, %v782
        %v930 = vpack.c.b16 %v786, %v783
        %v931 = vpack.c.b16 %v790, %v787
        %v932 = vpack.c.b16 %v791, %v788
        %v933 = vpack.c.b16 %v792, %v789
        %v934 = vpack.c.b16 %v796, %v793
        %v935 = vpack.c.b16 %v797, %v794
        %v936 = vpack.c.b16 %v798, %v795
        %v937 = vpack.c.b16 %v802, %v799
        %v938 = vpack.c.b16 %v803, %v800
        %v939 = vpack.c.b16 %v804, %v801
        %v940 = vpack.c.b16 %v808, %v805
        %v941 = vpack.c.b16 %v809, %v806
        %v942 = vpack.c.b16 %v810, %v807
        %v943 = vpack.c.b16 %v814, %v811
        %v944 = vpack.c.b16 %v815, %v812
        %v945 = vpack.c.b16 %v816, %v813
        %v946 = vpack.c.b16 %v820, %v817
        %v947 = vpack.c.b16 %v821, %v818
        %v948 = vpack.c.b16 %v822, %v819
        %v949 = vpack.c.b16 %v826, %v823
        %v950 = vpack.c.b16 %v827, %v824
        %v951 = vpack.c.b16 %v828, %v825
        %v952 = vpack.c.b16 %v832, %v829
        %v953 = vpack.c.b16 %v833, %v830
        %v954 = vpack.c.b16 %v834, %v831
        %v955 = vpack.c.b16 %v838, %v835
        %v956 = vpack.c.b16 %v839, %v836
        %v957 = vpack.c.b16 %v840, %v837
        %v958 = vpack.c.b16 %v844, %v841
        %v959 = vpack.c.b16 %v845, %v842
        %v960 = vpack.c.b16 %v846, %v843
        %v961 = vpack.c.b16 %v850, %v847
        %v962 = vpack.c.b16 %v851, %v848
        %v963 = vpack.c.b16 %v852, %v849
        %v964 = vpack.c.b16 %v856, %v853
        %v965 = vpack.c.b16 %v857, %v854
        %v966 = vpack.c.b16 %v858, %v855
        %v967 = vpack.c.b16 %v862, %v859
        %v968 = vpack.c.b16 %v863, %v860
        %v969 = vpack.c.b16 %v864, %v861
        %v970 = vpack.c.b16 %v868, %v865
        %v971 = vpack.c.b16 %v869, %v866
        %v972 = vpack.c.b16 %v870, %v867
        %v973 = vpack.c.b16 %v874, %v871
        %v974 = vpack.c.b16 %v875, %v872
        %v975 = vpack.c.b16 %v876, %v873
        %v976 = vpack.c.b16 %v880, %v877
        %v977 = vpack.c.b16 %v881, %v878
        %v978 = vpack.c.b16 %v882, %v879
        %1075 = vmatpush.bf16.msra.mxu0 %v904
        %1076 = vmatpush.bf16.msra.mxu0 %v901
        %1077 = vmatpush.bf16.msra.mxu0 %v898
        %1078 = vmatpush.bf16.msra.mxu0 %v895
        %1079 = vmatpush.bf16.msra.mxu0 %v892
        %1080 = vmatpush.bf16.msra.mxu0 %v889
        %1081 = vmatpush.bf16.msra.mxu0 %v886
        %1082 = vmatpush.bf16.msra.mxu0 %v883
        %1083 = vmatmul.bf16.gmra.mxu0 %v423
        %v1084 = vpop.f32.mrf.mxu0
        %v1085 = vadd.f32 %v557, %v1084
        %v1086 = vpop.f32.mrf.mxu0
        %v1087 = vadd.f32 %v557, %v1086
        %1088 = vdwg.mxu0
        %1089 = vmatpush.bf16.msra.mxu0 %v928
        %1090 = vmatpush.bf16.msra.mxu0 %v925
        %1091 = vmatpush.bf16.msra.mxu0 %v922
        %1092 = vmatpush.bf16.msra.mxu0 %v919
        %1093 = vmatpush.bf16.msra.mxu0 %v916
        %1094 = vmatpush.bf16.msra.mxu0 %v913
        %1095 = vmatpush.bf16.msra.mxu0 %v910
        %1096 = vmatpush.bf16.msra.mxu0 %v907
        %1097 = vmatmul.bf16.gmra.mxu0 %v424
        %v1098 = vpop.f32.mrf.mxu0
        %v1099 = vadd.f32 %v1085, %v1098
        %v1100 = vpop.f32.mrf.mxu0
        %v1101 = vadd.f32 %v1087, %v1100
        %1102 = vdwg.mxu0
        %1103 = vmatpush.bf16.msra.mxu0 %v952
        %1104 = vmatpush.bf16.msra.mxu0 %v949
        %1105 = vmatpush.bf16.msra.mxu0 %v946
        %1106 = vmatpush.bf16.msra.mxu0 %v943
        %1107 = vmatpush.bf16.msra.mxu0 %v940
        %1108 = vmatpush.bf16.msra.mxu0 %v937
        %1109 = vmatpush.bf16.msra.mxu0 %v934
        %1110 = vmatpush.bf16.msra.mxu0 %v931
        %1111 = vmatmul.bf16.gmra.mxu0 %v425
        %v1112 = vpop.f32.mrf.mxu0
        %v1113 = vadd.f32 %v1099, %v1112
        %v1114 = vpop.f32.mrf.mxu0
        %v1115 = vadd.f32 %v1101, %v1114
        %1116 = vdwg.mxu0
        %1117 = vmatpush.bf16.msra.mxu0 %v976
        %1118 = vmatpush.bf16.msra.mxu0 %v973
        %1119 = vmatpush.bf16.msra.mxu0 %v970
        %1120 = vmatpush.bf16.msra.mxu0 %v967
        %1121 = vmatpush.bf16.msra.mxu0 %v964
        %1122 = vmatpush.bf16.msra.mxu0 %v961
        %1123 = vmatpush.bf16.msra.mxu0 %v958
        %1124 = vmatpush.bf16.msra.mxu0 %v955
        %1125 = vmatmul.bf16.gmra.mxu0 %v426
        %v1126 = vpop.f32.mrf.mxu0
        %v1127 = vadd.f32 %v1113, %v1126
        %v1128 = vpop.f32.mrf.mxu0
        %v1129 = vadd.f32 %v1115, %v1128
        %1130 = vdwg.mxu0
        %1131 = vmatpush.bf16.msra.mxu0 %v905
        %1132 = vmatpush.bf16.msra.mxu0 %v902
        %1133 = vmatpush.bf16.msra.mxu0 %v899
        %1134 = vmatpush.bf16.msra.mxu0 %v896
        %1135 = vmatpush.bf16.msra.mxu0 %v893
        %1136 = vmatpush.bf16.msra.mxu0 %v890
        %1137 = vmatpush.bf16.msra.mxu0 %v887
        %1138 = vmatpush.bf16.msra.mxu0 %v884
        %1139 = vmatmul.bf16.gmra.mxu0 %v423
        %v1140 = vpop.f32.mrf.mxu0
        %v1141 = vadd.f32 %v558, %v1140
        %v1142 = vpop.f32.mrf.mxu0
        %v1143 = vadd.f32 %v558, %v1142
        %1144 = vdwg.mxu0
        %1145 = vmatpush.bf16.msra.mxu0 %v929
        %1146 = vmatpush.bf16.msra.mxu0 %v926
        %1147 = vmatpush.bf16.msra.mxu0 %v923
        %1148 = vmatpush.bf16.msra.mxu0 %v920
        %1149 = vmatpush.bf16.msra.mxu0 %v917
        %1150 = vmatpush.bf16.msra.mxu0 %v914
        %1151 = vmatpush.bf16.msra.mxu0 %v911
        %1152 = vmatpush.bf16.msra.mxu0 %v908
        %1153 = vmatmul.bf16.gmra.mxu0 %v424
        %v1154 = vpop.f32.mrf.mxu0
        %v1155 = vadd.f32 %v1141, %v1154
        %v1156 = vpop.f32.mrf.mxu0
        %v1157 = vadd.f32 %v1143, %v1156
        %1158 = vdwg.mxu0
        %1159 = vmatpush.bf16.msra.mxu0 %v953
        %1160 = vmatpush.bf16.msra.mxu0 %v950
        %1161 = vmatpush.bf16.msra.mxu0 %v947
        %1162 = vmatpush.bf16.msra.mxu0 %v944
        %1163 = vmatpush.bf16.msra.mxu0 %v941
        %1164 = vmatpush.bf16.msra.mxu0 %v938
        %1165 = vmatpush.bf16.msra.mxu0 %v935
        %1166 = vmatpush.bf16.msra.mxu0 %v932
        %1167 = vmatmul.bf16.gmra.mxu0 %v425
        %v1168 = vpop.f32.mrf.mxu0
        %v1169 = vadd.f32 %v1155, %v1168
        %v1170 = vpop.f32.mrf.mxu0
        %v1171 = vadd.f32 %v1157, %v1170
        %1172 = vdwg.mxu0
        %1173 = vmatpush.bf16.msra.mxu0 %v977
        %1174 = vmatpush.bf16.msra.mxu0 %v974
        %1175 = vmatpush.bf16.msra.mxu0 %v971
        %1176 = vmatpush.bf16.msra.mxu0 %v968
        %1177 = vmatpush.bf16.msra.mxu0 %v965
        %1178 = vmatpush.bf16.msra.mxu0 %v962
        %1179 = vmatpush.bf16.msra.mxu0 %v959
        %1180 = vmatpush.bf16.msra.mxu0 %v956
        %1181 = vmatmul.bf16.gmra.mxu0 %v426
        %v1182 = vpop.f32.mrf.mxu0
        %v1183 = vadd.f32 %v1169, %v1182
        %v1184 = vpop.f32.mrf.mxu0
        %v1185 = vadd.f32 %v1171, %v1184
        %1186 = vdwg.mxu0
        %1187 = vmatpush.bf16.msra.mxu0 %v906
        %1188 = vmatpush.bf16.msra.mxu0 %v903
        %1189 = vmatpush.bf16.msra.mxu0 %v900
        %1190 = vmatpush.bf16.msra.mxu0 %v897
        %1191 = vmatpush.bf16.msra.mxu0 %v894
        %1192 = vmatpush.bf16.msra.mxu0 %v891
        %1193 = vmatpush.bf16.msra.mxu0 %v888
        %1194 = vmatpush.bf16.msra.mxu0 %v885
        %1195 = vmatmul.bf16.gmra.mxu0 %v423
        %v1196 = vpop.f32.mrf.mxu0
        %v1197 = vadd.f32 %v559, %v1196
        %v1198 = vpop.f32.mrf.mxu0
        %v1199 = vadd.f32 %v559, %v1198
        %1200 = vdwg.mxu0
        %1201 = vmatpush.bf16.msra.mxu0 %v930
        %1202 = vmatpush.bf16.msra.mxu0 %v927
        %1203 = vmatpush.bf16.msra.mxu0 %v924
        %1204 = vmatpush.bf16.msra.mxu0 %v921
        %1205 = vmatpush.bf16.msra.mxu0 %v918
        %1206 = vmatpush.bf16.msra.mxu0 %v915
        %1207 = vmatpush.bf16.msra.mxu0 %v912
        %1208 = vmatpush.bf16.msra.mxu0 %v909
        %1209 = vmatmul.bf16.gmra.mxu0 %v424
        %v1210 = vpop.f32.mrf.mxu0
        %v1211 = vadd.f32 %v1197, %v1210
        %v1212 = vpop.f32.mrf.mxu0
        %v1213 = vadd.f32 %v1199, %v1212
        %1214 = vdwg.mxu0
        %1215 = vmatpush.bf16.msra.mxu0 %v954
        %1216 = vmatpush.bf16.msra.mxu0 %v951
        %1217 = vmatpush.bf16.msra.mxu0 %v948
        %1218 = vmatpush.bf16.msra.mxu0 %v945
        %1219 = vmatpush.bf16.msra.mxu0 %v942
        %1220 = vmatpush.bf16.msra.mxu0 %v939
        %1221 = vmatpush.bf16.msra.mxu0 %v936
        %1222 = vmatpush.bf16.msra.mxu0 %v933
        %1223 = vmatmul.bf16.gmra.mxu0 %v425
        %v1224 = vpop.f32.mrf.mxu0
        %v1225 = vadd.f32 %v1211, %v1224
        %v1226 = vpop.f32.mrf.mxu0
        %v1227 = vadd.f32 %v1213, %v1226
        %1228 = vdwg.mxu0
        %1229 = vmatpush.bf16.msra.mxu0 %v978
        %1230 = vmatpush.bf16.msra.mxu0 %v975
        %1231 = vmatpush.bf16.msra.mxu0 %v972
        %1232 = vmatpush.bf16.msra.mxu0 %v969
        %1233 = vmatpush.bf16.msra.mxu0 %v966
        %1234 = vmatpush.bf16.msra.mxu0 %v963
        %1235 = vmatpush.bf16.msra.mxu0 %v960
        %1236 = vmatpush.bf16.msra.mxu0 %v957
        %1237 = vmatmul.bf16.gmra.mxu0 %v426
        %v1238 = vpop.f32.mrf.mxu0
        %v1239 = vadd.f32 %v1225, %v1238
        %v1240 = vpop.f32.mrf.mxu0
        %v1241 = vadd.f32 %v1227, %v1240
        %1242 = vdwg.mxu0
        %v1243 = vmax.f32 %v1127, 0.0
        %v1244 = vmax.f32 %v1183, 0.0
        %v1245 = vmax.f32 %v1239, 0.0
        %v1246 = vmax.f32 %v1129, 0.0
        %v1247 = vmax.f32 %v1185, 0.0
        %v1248 = vmax.f32 %v1241, 0.0
        %v1249 = vpack.c.bf16 %v1246, %v1243
        %v1250 = vpack.c.bf16 %v1247, %v1244
        %v1251 = vpack.c.bf16 %v1248, %v1245
        %v1252 = vld [vmem:[#allocation4] sm:$0xf]
        %v1253 = vld [vmem:[#allocation4 + $0x4] sm:$0xf]
        %v1254 = vld [vmem:[#allocation4 + $0x8] sm:$0xf]
        %v1255 = vld [vmem:[#allocation4 + $0xc] sm:$0xf]
        %v1256 = vld [vmem:[#allocation4 + $0x10] sm:$0xf]
        %v1257 = vld [vmem:[#allocation4 + $0x14] sm:$0xf]
        %v1258 = vld [vmem:[#allocation4 + $0x18] sm:$0xf]
        %v1259 = vld [vmem:[#allocation4 + $0x1c] sm:$0xf]
        %v1260 = vld [vmem:[#allocation4 + $0x20] sm:$0xf]
        %v1261 = vld [vmem:[#allocation4 + $0x24] sm:$0xf]
        %v1262 = vld [vmem:[#allocation4 + $0x28] sm:$0xf]
        %v1263 = vld [vmem:[#allocation4 + $0x2c] sm:$0xf]
        %v1264 = vld [vmem:[#allocation4 + $0x30] sm:$0xf]
        %v1265 = vld [vmem:[#allocation4 + $0x34] sm:$0xf]
        %v1266 = vld [vmem:[#allocation4 + $0x38] sm:$0xf]
        %v1267 = vld [vmem:[#allocation4 + $0x3c] sm:$0xf]
        %v1268 = vld [vmem:[#allocation4 + $0x40] sm:$0xf]
        %v1269 = vld [vmem:[#allocation4 + $0x44] sm:$0xf]
        %v1270 = vld [vmem:[#allocation4 + $0x48] sm:$0xf]
        %v1271 = vld [vmem:[#allocation4 + $0x4c] sm:$0xf]
        %v1272 = vld [vmem:[#allocation4 + $0x50] sm:$0xf]
        %v1273 = vld [vmem:[#allocation4 + $0x54] sm:$0xf]
        %v1274 = vld [vmem:[#allocation4 + $0x58] sm:$0xf]
        %v1275 = vld [vmem:[#allocation4 + $0x5c] sm:$0xf]
        %v1276 = vld [vmem:[#allocation4 + $0x60] sm:$0xf]
        %v1277 = vld [vmem:[#allocation4 + $0x64] sm:$0xf]
        %v1278 = vld [vmem:[#allocation4 + $0x68] sm:$0xf]
        %v1279 = vld [vmem:[#allocation4 + $0x6c] sm:$0xf]
        %v1280 = vld [vmem:[#allocation4 + $0x70] sm:$0xf]
        %v1281 = vld [vmem:[#allocation4 + $0x74] sm:$0xf]
        %v1282 = vld [vmem:[#allocation4 + $0x78] sm:$0xf]
        %v1283 = vld [vmem:[#allocation4 + $0x7c] sm:$0xf]
        %v1284 = vld [vmem:[#allocation4 + $0x80] sm:$0xf]
        %v1285 = vld [vmem:[#allocation4 + $0x84] sm:$0xf]
        %v1286 = vld [vmem:[#allocation4 + $0x88] sm:$0xf]
        %v1287 = vld [vmem:[#allocation4 + $0x8c] sm:$0xf]
        %v1288 = vld [vmem:[#allocation4 + $0x90] sm:$0xf]
        %v1289 = vld [vmem:[#allocation4 + $0x94] sm:$0xf]
        %v1290 = vld [vmem:[#allocation4 + $0x98] sm:$0xf]
        %v1291 = vld [vmem:[#allocation4 + $0x9c] sm:$0xf]
        %v1292 = vld [vmem:[#allocation4 + $0xa0] sm:$0xf]
        %v1293 = vld [vmem:[#allocation4 + $0xa4] sm:$0xf]
        %v1294 = vld [vmem:[#allocation4 + $0xa8] sm:$0xf]
        %v1295 = vld [vmem:[#allocation4 + $0xac] sm:$0xf]
        %v1296 = vld [vmem:[#allocation4 + $0xb0] sm:$0xf]
        %v1297 = vld [vmem:[#allocation4 + $0xb4] sm:$0xf]
        %v1298 = vld [vmem:[#allocation4 + $0xb8] sm:$0xf]
        %v1299 = vld [vmem:[#allocation4 + $0xbc] sm:$0xf]
        %v1300 = vld [vmem:[%s6] sm:$0x1]
        %v1302 = vperm.slane %v1300, 0
        %v1352 = vunpack.c.l.b16 %v1252
        %v1353 = vunpack.c.l.b16 %v1253
        %v1354 = vunpack.c.l.b16 %v1254
        %v1355 = vunpack.c.l.b16 %v1255
        %v1356 = vunpack.c.l.b16 %v1256
        %v1357 = vunpack.c.l.b16 %v1257
        %v1358 = vunpack.c.l.b16 %v1258
        %v1359 = vunpack.c.l.b16 %v1259
        %v1360 = vunpack.c.l.b16 %v1260
        %v1361 = vunpack.c.l.b16 %v1261
        %v1362 = vunpack.c.l.b16 %v1262
        %v1363 = vunpack.c.l.b16 %v1263
        %v1364 = vunpack.c.l.b16 %v1264
        %v1365 = vunpack.c.l.b16 %v1265
        %v1366 = vunpack.c.l.b16 %v1266
        %v1367 = vunpack.c.l.b16 %v1267
        %v1368 = vunpack.c.l.b16 %v1268
        %v1369 = vunpack.c.l.b16 %v1269
        %v1370 = vunpack.c.l.b16 %v1270
        %v1371 = vunpack.c.l.b16 %v1271
        %v1372 = vunpack.c.l.b16 %v1272
        %v1373 = vunpack.c.l.b16 %v1273
        %v1374 = vunpack.c.l.b16 %v1274
        %v1375 = vunpack.c.l.b16 %v1275
        %v1376 = vunpack.c.l.b16 %v1276
        %v1377 = vunpack.c.l.b16 %v1277
        %v1378 = vunpack.c.l.b16 %v1278
        %v1379 = vunpack.c.l.b16 %v1279
        %v1380 = vunpack.c.l.b16 %v1280
        %v1381 = vunpack.c.l.b16 %v1281
        %v1382 = vunpack.c.l.b16 %v1282
        %v1383 = vunpack.c.l.b16 %v1283
        %v1384 = vunpack.c.l.b16 %v1284
        %v1385 = vunpack.c.l.b16 %v1285
        %v1386 = vunpack.c.l.b16 %v1286
        %v1387 = vunpack.c.l.b16 %v1287
        %v1388 = vunpack.c.l.b16 %v1288
        %v1389 = vunpack.c.l.b16 %v1289
        %v1390 = vunpack.c.l.b16 %v1290
        %v1391 = vunpack.c.l.b16 %v1291
        %v1392 = vunpack.c.l.b16 %v1292
        %v1393 = vunpack.c.l.b16 %v1293
        %v1394 = vunpack.c.l.b16 %v1294
        %v1395 = vunpack.c.l.b16 %v1295
        %v1396 = vunpack.c.l.b16 %v1296
        %v1397 = vunpack.c.l.b16 %v1297
        %v1398 = vunpack.c.l.b16 %v1298
        %v1399 = vunpack.c.l.b16 %v1299
        %v1400 = vpack.c.b16 %v1353, %v1352
        %v1401 = vpack.c.b16 %v1355, %v1354
        %v1402 = vpack.c.b16 %v1357, %v1356
        %v1403 = vpack.c.b16 %v1359, %v1358
        %v1404 = vpack.c.b16 %v1361, %v1360
        %v1405 = vpack.c.b16 %v1363, %v1362
        %v1406 = vpack.c.b16 %v1365, %v1364
        %v1407 = vpack.c.b16 %v1367, %v1366
        %v1408 = vpack.c.b16 %v1369, %v1368
        %v1409 = vpack.c.b16 %v1371, %v1370
        %v1410 = vpack.c.b16 %v1373, %v1372
        %v1411 = vpack.c.b16 %v1375, %v1374
        %v1412 = vpack.c.b16 %v1377, %v1376
        %v1413 = vpack.c.b16 %v1379, %v1378
        %v1414 = vpack.c.b16 %v1381, %v1380
        %v1415 = vpack.c.b16 %v1383, %v1382
        %v1416 = vpack.c.b16 %v1385, %v1384
        %v1417 = vpack.c.b16 %v1387, %v1386
        %v1418 = vpack.c.b16 %v1389, %v1388
        %v1419 = vpack.c.b16 %v1391, %v1390
        %v1420 = vpack.c.b16 %v1393, %v1392
        %v1421 = vpack.c.b16 %v1395, %v1394
        %v1422 = vpack.c.b16 %v1397, %v1396
        %v1423 = vpack.c.b16 %v1399, %v1398
        %1448 = vmatpush.bf16.msra.mxu0 %v1407
        %1449 = vmatpush.bf16.msra.mxu0 %v1406
        %1450 = vmatpush.bf16.msra.mxu0 %v1405
        %1451 = vmatpush.bf16.msra.mxu0 %v1404
        %1452 = vmatpush.bf16.msra.mxu0 %v1403
        %1453 = vmatpush.bf16.msra.mxu0 %v1402
        %1454 = vmatpush.bf16.msra.mxu0 %v1401
        %1455 = vmatpush.bf16.msra.mxu0 %v1400
        %1456 = vmatmul.bf16.gmra.mxu0 %v1249
        %v1457 = vpop.f32.mrf.mxu0
        %v1458 = vadd.f32 %v1302, %v1457
        %v1459 = vpop.f32.mrf.mxu0
        %v1460 = vadd.f32 %v1302, %v1459
        %1461 = vdwg.mxu0
        %1462 = vmatpush.bf16.msra.mxu0 %v1415
        %1463 = vmatpush.bf16.msra.mxu0 %v1414
        %1464 = vmatpush.bf16.msra.mxu0 %v1413
        %1465 = vmatpush.bf16.msra.mxu0 %v1412
        %1466 = vmatpush.bf16.msra.mxu0 %v1411
        %1467 = vmatpush.bf16.msra.mxu0 %v1410
        %1468 = vmatpush.bf16.msra.mxu0 %v1409
        %1469 = vmatpush.bf16.msra.mxu0 %v1408
        %1470 = vmatmul.bf16.gmra.mxu0 %v1250
        %v1471 = vpop.f32.mrf.mxu0
        %v1472 = vadd.f32 %v1458, %v1471
        %v1473 = vpop.f32.mrf.mxu0
        %v1474 = vadd.f32 %v1460, %v1473
        %1475 = vdwg.mxu0
        %1476 = vmatpush.bf16.msra.mxu0 %v1423
        %1477 = vmatpush.bf16.msra.mxu0 %v1422
        %1478 = vmatpush.bf16.msra.mxu0 %v1421
        %1479 = vmatpush.bf16.msra.mxu0 %v1420
        %1480 = vmatpush.bf16.msra.mxu0 %v1419
        %1481 = vmatpush.bf16.msra.mxu0 %v1418
        %1482 = vmatpush.bf16.msra.mxu0 %v1417
        %1483 = vmatpush.bf16.msra.mxu0 %v1416
        %1484 = vmatmul.bf16.gmra.mxu0 %v1251
        %v1485 = vpop.f32.mrf.mxu0
        %v1486 = vadd.f32 %v1472, %v1485
        %v1487 = vpop.f32.mrf.mxu0
        %v1488 = vadd.f32 %v1474, %v1487
        %1489 = vdwg.mxu0
        %v1490 = vtanh.pop %v1486
        %v1491 = vtanh.pop %v1488
        %v1492 = vpack.c.bf16 %v1490, %v1490
        %v1493 = vpack.c.bf16 %v1491, %v1491
        %1494 = vst [vmem:[%s314] sm:$0xf] %v1492
        %1495 = vst [vmem:[%s314 + $0x4] sm:$0xf] %v1493
        %s1496 = smul.u32 2, %s20
        %p1497 = scmp.lt.s32.totalorder %s1496, 3
        %s1498 = scalar_select %p1497, %s1496, 3
        %s1499 = smul.addr %s1498, 4
        %s1500 = scalar_lea.vmem %s7, %s1499
        // Predicated region
        $region57: #{actor_forward.1} parent=47 // pred_check
          %p1501 = pneg %p190
        $region58: #{actor_forward.1} parent=47 // pred_check_branch
          %1503 = sbr.rel (%p1501) target = $region60
        $region59: #{actor_forward.1} parent=47 // pred_region
          %s1504 = smul.u32 2, %s20
        $region60: #{actor_forward.1} parent=47 // pred_fallthru
          _
      $region48: #{actor_forward.1} parent=5 // pred_fallthru
        _
      %p1505 = scmp.le.s32.totalorder 2, %s15
      // Predicated region
      $region61: #{actor_forward.1} parent=5 // pred_check
        %p1506 = pneg %p1505
      $region62: #{actor_forward.1} parent=5 // pred_check_branch
        %1508 = sbr.rel (%p1506) target = $region64
      $region63: #{actor_forward.1} parent=5 // pred_region
        %s1509 = ssub.s32 %s15, 2
        // Predicated region
        $region65: #{actor_forward.1} parent=63 // pred_check
          %p1510 = pneg %p196
        $region66: #{actor_forward.1} parent=63 // pred_check_branch
          %1512 = sbr.rel (%p1510) target = $region68
        $region67: #{actor_forward.1} parent=63 // pred_region
          %s1513 = smul.u32 2, %s21
          %p1514 = scmp.lt.s32.totalorder %s1513, 3
          %s1515 = scalar_select %p1514, %s1513, 3
          %s1516 = smul.addr %s1515, 4
          %s1517 = scalar_lea.vmem %s7, %s1516
        $region68: #{actor_forward.1} parent=63 // pred_fallthru
          _
      $region64: #{actor_forward.1} parent=5 // pred_fallthru
        _
    $region6: #{actor_forward.1} parent=1 // loop_footer
      %s19 = sadd.s32 1, %s15
    $region7: #{actor_forward.1} parent=1 // loop_footer_branch
      %14 = sbr.rel target = $region3
    $region8: #{actor_forward.1} parent=1 // loop_exit
      _
    %1518 = vsyncpa [#allocation3], 1
    %s1519 = scalar_lea.sflag [#allocation3], 1
    %1520 = vsyncpa %s1519, 1
    %1521 = vsyncpa [#allocation5], 1

</llo_original>
